<compile_context>
chip_gen: v7x
topology: tpu7x:2x2x1
jax: 0.10.0
libtpu: 0.0.40
codegen_flags: <defaults>
</compile_context>

<pallas_src>
import functools

import jax
import jax.numpy as jnp
from jax.experimental import pallas as pl
from jax.experimental.pallas import tpu as pltpu

EPS = 1e-5
_BLOCK_BUDGET = 4 * 1024 * 1024    # ~4 MiB per x block (review: 2-4 MiB sweet spot)
_FUSED_BUDGET = 4 * 1024 * 1024    # f32-equivalent bytes per single-pass channel tile
_VMEM_LIMIT = 48 * 1024 * 1024     # safe on v5e/v6e (128 MiB phys) and v7x (64 MiB phys)


def _cdiv(a, b):
    return (a + b - 1) // b


def _round_up(a, b):
    return _cdiv(a, b) * b


def _sublane_multiple(dtype):
    """Sublane packing multiple: 8 for 4-byte, 16 for 2-byte, 32 for 1-byte dtypes."""
    return max(8, 32 // jnp.dtype(dtype).itemsize)


def _pick_hw_tile(hw, itemsize, c_min):
    """Lane tile (multiple of 128) and padded HW such that the tile divides it."""
    hw128 = _round_up(hw, 128)
    cap = max(128, (_BLOCK_BUDGET // (itemsize * max(1, c_min))) // 128 * 128)
    if hw128 <= cap:
        return hw128, hw128
    k = _cdiv(hw, cap)
    t_hw = _round_up(_cdiv(hw, k), 128)
    return t_hw, k * t_hw


def _pick_c_tile(c, sub_mult, max_ct):
    """Largest legal channel tile <= max_ct; prefer >=2 tiles (v7x dual-TC)."""
    if c < sub_mult or c % sub_mult != 0:
        return c                                   # full-dim block is always legal
    max_ct = max(sub_mult, max_ct)
    divs = [d for d in range(sub_mult, c + 1, sub_mult)
            if c % d == 0 and d <= max_ct]
    if not divs:
        return sub_mult
    pref = [d for d in divs if c // d >= 2]        # keep both TensorCores busy
    return max(pref) if pref else max(divs)


# --------------------------------------------------------------------------- kernels
def _stats_kernel(x_ref, sum_ref, ssq_ref):
    """Per-channel sum / sum-of-squares, accumulated across the N / HW grid axes."""
    first = jnp.logical_and(pl.program_id(1) == 0, pl.program_id(2) == 0)

    @pl.when(first)
    def _():
        sum_ref[...] = jnp.zeros_like(sum_ref)
        ssq_ref[...] = jnp.zeros_like(ssq_ref)

    x = x_ref[0].astype(jnp.float32)                       # (c_t, t_hw), one read
    ones = jnp.ones((x.shape[1], 1), jnp.float32)
    # Lane reduction on the (otherwise idle) MXU instead of VALU-tree + XLU reduce.
    sum_ref[...] += jnp.dot(x, ones, preferred_element_type=jnp.float32)
    ssq_ref[...] += jnp.dot(x * x, ones, preferred_element_type=jnp.float32)


def _norm_kernel(x_ref, sum_ref, ssq_ref, g_ref, b_ref, o_ref, *, inv_m, compute_dtype):
    """Fold stats+affine into per-channel scale/shift, then normalize + ReLU."""
    mean = sum_ref[...] * inv_m                            # (c_t, 1) f32
    var = jnp.maximum(ssq_ref[...] * inv_m - mean * mean, 0.0)
    scale_f = g_ref[...] * jax.lax.rsqrt(var + EPS)
    shift_f = b_ref[...] - mean * scale_f
    scale = scale_f.astype(compute_dtype)
    shift = shift_f.astype(compute_dtype)
    x = x_ref[...].astype(compute_dtype)                   # (1, c_t, t_hw)
    y = x * scale + shift
    o_ref[...] = jnp.maximum(y, 0.0).astype(o_ref.dtype)


def _fused_kernel(x_ref, g_ref, b_ref, o_ref, *, inv_m, compute_dtype):
    """Single-pass fast path: stats + normalize + ReLU for one whole channel tile."""
    xf = x_ref[...].astype(jnp.float32)                    # (n, c_t, hw_p)
    s = jnp.sum(xf, axis=(0, 2), keepdims=True)            # (1, c_t, 1); padded zeros
    ssq = jnp.sum(xf * xf, axis=(0, 2), keepdims=True)     # contribute exactly 0
    mean = s * inv_m
    var = jnp.maximum(ssq * inv_m - mean * mean, 0.0)
    scale_f = g_ref[...] * jax.lax.rsqrt(var + EPS)        # (1, c_t, 1)
    shift_f = b_ref[...] - mean * scale_f
    if compute_dtype == jnp.float32:
        x = xf
    else:
        x = x_ref[...]                                     # keep bf16 on the VPU
    y = x * scale_f.astype(compute_dtype) + shift_f.astype(compute_dtype)
    o_ref[...] = jnp.maximum(y, 0.0).astype(o_ref.dtype)


# --------------------------------------------------------------------------- wrapper
def batch_activate(x, gamma, beta):
    """x: (N, C, H, W); gamma, beta: (C,).  BatchNorm2d (batch stats) + ReLU."""
    n, c, h, w = x.shape
    hw = h * w
    m = n * hw                                             # true reduction size
    inv_m = 1.0 / m
    itemsize = jnp.dtype(x.dtype).itemsize
    sub_mult = _sublane_multiple(x.dtype)
    compute_dtype = jnp.bfloat16 if x.dtype == jnp.bfloat16 else jnp.float32

    c_min = c if (c < sub_mult or c % sub_mult != 0) else sub_mult
    t_hw, hw_p = _pick_hw_tile(hw, itemsize, c_min)

    x3 = x.reshape(n, c, hw)                               # free reshape, no transpose
    if hw_p != hw:                                         # lane-pad to multiple of 128
        x3 = jnp.pad(x3, ((0, 0), (0, 0), (0, hw_p - hw)))

    g2 = gamma.reshape(c, 1).astype(jnp.float32)
    b2 = beta.reshape(c, 1).astype(jnp.float32)

    total_elems = n * c * hw_p

    if n * c_min * hw_p * 4 <= _FUSED_BUDGET:
        # ---- single-pass fast path: 1 read + 1 write of HBM -------------------
        c_t = _pick_c_tile(c, sub_mult, _FUSED_BUDGET // max(1, n * hw_p * 4))
        grid = (c // c_t,)
        x_spec = pl.BlockSpec((n, c_t, hw_p), lambda ci: (0, ci, 0))
        ch_spec = pl.BlockSpec((c_t, 1), lambda ci: (ci, 0))
        out3 = pl.pallas_call(
            functools.partial(_fused_kernel, inv_m=inv_m, compute_dtype=compute_dtype),
            out_shape=jax.ShapeDtypeStruct((n, c, hw_p), x.dtype),
            grid=grid,
            in_specs=[x_spec, ch_spec, ch_spec],
            out_specs=x_spec,
            compiler_params=pltpu.CompilerParams(
                dimension_semantics=("parallel",),
                vmem_limit_bytes=_VMEM_LIMIT,
            ),
            cost_estimate=pl.CostEstimate(
                flops=8 * total_elems,
                transcendentals=c,
                bytes_accessed=2 * total_elems * itemsize + 8 * c),
        )(x3, g2, b2)
    else:
        # ---- two tiled passes: 2 reads + 1 write of HBM -----------------------
        c_t = _pick_c_tile(c, sub_mult, _BLOCK_BUDGET // (itemsize * t_hw))
        grid = (c // c_t, n, hw_p // t_hw)                 # reduction axes last
        n_blocks = (c // c_t) * n * (hw_p // t_hw)
        x_spec = pl.BlockSpec((1, c_t, t_hw), lambda ci, ni, ji: (ni, ci, ji))
        ch_spec = pl.BlockSpec((c_t, 1), lambda ci, ni, ji: (ci, 0))

        # pass 1: per-channel sum / sum-of-squares (accumulated across N / HW axes)
        sums, ssqs = pl.pallas_call(
            _stats_kernel,
            out_shape=(jax.ShapeDtypeStruct((c, 1), jnp.float32),
                       jax.ShapeDtypeStruct((c, 1), jnp.float32)),
            grid=grid,
            in_specs=[x_spec],
            out_specs=(ch_spec, ch_spec),
            compiler_params=pltpu.CompilerParams(
                dimension_semantics=("parallel", "arbitrary", "arbitrary"),
                vmem_limit_bytes=_VMEM_LIMIT,
            ),
            cost_estimate=pl.CostEstimate(
                flops=5 * total_elems,
                transcendentals=0,
                bytes_accessed=total_elems * itemsize + 8 * c),
        )(x3)

        # pass 2: scale/shift folding + normalize + affine + ReLU (fully parallel)
        out3 = pl.pallas_call(
            functools.partial(_norm_kernel, inv_m=inv_m, compute_dtype=compute_dtype),
            out_shape=jax.ShapeDtypeStruct((n, c, hw_p), x.dtype),
            grid=grid,
            in_specs=[x_spec, ch_spec, ch_spec, ch_spec, ch_spec],
            out_specs=x_spec,
            compiler_params=pltpu.CompilerParams(
                dimension_semantics=("parallel", "parallel", "parallel"),
                vmem_limit_bytes=_VMEM_LIMIT,
            ),
            cost_estimate=pl.CostEstimate(
                flops=3 * total_elems + 8 * c * n_blocks,
                transcendentals=c_t * n_blocks,
                bytes_accessed=2 * total_elems * itemsize + 16 * c),
        )(x3, sums, ssqs, g2, b2)

    if hw_p != hw:
        out3 = out3[:, :, :hw]                             # drop lane padding
    return out3.reshape(n, c, h, w)                        # free reshape back to NCHW


def _reference(x, gamma, beta):
    xf = x.astype(jnp.float32)
    mean = jnp.mean(xf, axis=(0, 2, 3), keepdims=True)
    var = jnp.mean((xf - mean) ** 2, axis=(0, 2, 3), keepdims=True)
    y = (xf - mean) * jax.lax.rsqrt(var + EPS)
    y = y * gamma.reshape(1, -1, 1, 1) + beta.reshape(1, -1, 1, 1)
    return jnp.maximum(y, 0.0).astype(x.dtype)


if __name__ == "__main__":
    key = jax.random.PRNGKey(0)
    kx, kg, kb = jax.random.split(key, 3)
    N, C, H, W = 2, 4, 16, 16
    x = jax.random.normal(kx, (N, C, H, W), dtype=jnp.float32)
    # Exercise the affine path with deterministic, non-trivial weight/bias.
    gamma = 1.0 + 0.1 * jax.random.normal(kg, (C,), dtype=jnp.float32)
    beta = 0.1 * jax.random.normal(kb, (C,), dtype=jnp.float32)

    out = jax.block_until_ready(batch_activate(x, gamma, beta))
    ref = _reference(x, gamma, beta)

    assert out.shape == (N, C, H, W)
    assert jnp.allclose(out, ref, atol=1e-4, rtol=1e-4), float(
        jnp.max(jnp.abs(out - ref))
    )
    print("KERNEL_OK")
</pallas_src>

<mosaic_0001>
module attributes {stable_mosaic.version = 11 : i64} {
  func.func @_fused_kernel(%arg0: i32, %arg1: memref<2x4x256xf32, #tpu.memory_space<vmem>>, %arg2: memref<4x1xf32, #tpu.memory_space<vmem>>, %arg3: memref<4x1xf32, #tpu.memory_space<vmem>>, %arg4: memref<2x4x256xf32, #tpu.memory_space<vmem>>) attributes {dimension_semantics = [#tpu.dimension_semantics<parallel>], iteration_bounds = array<i64: 1>, scalar_prefetch = 0 : i64, scratch_operands = 0 : i64, tpu.core_type = #tpu.core_type<tc>, window_params = [{transform_indices = @transform_0, window_bounds = array<i64: 2, 4, 256>}, {transform_indices = @transform_1, window_bounds = array<i64: 4, 1>}, {transform_indices = @transform_2, window_bounds = array<i64: 4, 1>}, {transform_indices = @transform_3, window_bounds = array<i64: 2, 4, 256>}]} {
    %c0 = arith.constant 0 : index
    %c0_0 = arith.constant 0 : index
    %c0_1 = arith.constant 0 : index
    %0 = vector.load %arg1[%c0, %c0_0, %c0_1] : memref<2x4x256xf32, #tpu.memory_space<vmem>>, vector<2x4x256xf32>
    %cst = arith.constant dense<0.000000e+00> : vector<4xf32>
    %1 = vector.multi_reduction <add>, %0, %cst [0, 2] : vector<2x4x256xf32> to vector<4xf32>
    %2 = vector.shape_cast %1 : vector<4xf32> to vector<1x4x1xf32>
    %3 = arith.mulf %0, %0 : vector<2x4x256xf32>
    %cst_2 = arith.constant dense<0.000000e+00> : vector<4xf32>
    %4 = vector.multi_reduction <add>, %3, %cst_2 [0, 2] : vector<2x4x256xf32> to vector<4xf32>
    %5 = vector.shape_cast %4 : vector<4xf32> to vector<1x4x1xf32>
    %cst_3 = arith.constant 0.001953125 : f32
    %6 = vector.broadcast %cst_3 : f32 to vector<1x4x1xf32>
    %7 = arith.mulf %2, %6 : vector<1x4x1xf32>
    %cst_4 = arith.constant 0.001953125 : f32
    %8 = vector.broadcast %cst_4 : f32 to vector<1x4x1xf32>
    %9 = arith.mulf %5, %8 : vector<1x4x1xf32>
    %10 = arith.mulf %7, %7 : vector<1x4x1xf32>
    %11 = arith.subf %9, %10 : vector<1x4x1xf32>
    %cst_5 = arith.constant 0.000000e+00 : f32
    %12 = vector.broadcast %cst_5 : f32 to vector<1x4x1xf32>
    %13 = arith.maximumf %11, %12 : vector<1x4x1xf32>
    %c0_6 = arith.constant 0 : index
    %c0_7 = arith.constant 0 : index
    %14 = vector.load %arg2[%c0_6, %c0_7] : memref<4x1xf32, #tpu.memory_space<vmem>>, vector<4x1xf32>
    %cst_8 = arith.constant 9.99999974E-6 : f32
    %15 = vector.broadcast %cst_8 : f32 to vector<1x4x1xf32>
    %16 = arith.addf %13, %15 : vector<1x4x1xf32>
    %17 = math.rsqrt %16 : vector<1x4x1xf32>
    %18 = vector.shape_cast %14 : vector<4x1xf32> to vector<1x4x1xf32>
    %19 = arith.mulf %18, %17 : vector<1x4x1xf32>
    %c0_9 = arith.constant 0 : index
    %c0_10 = arith.constant 0 : index
    %20 = vector.load %arg3[%c0_9, %c0_10] : memref<4x1xf32, #tpu.memory_space<vmem>>, vector<4x1xf32>
    %21 = arith.mulf %7, %19 : vector<1x4x1xf32>
    %22 = vector.shape_cast %20 : vector<4x1xf32> to vector<1x4x1xf32>
    %23 = arith.subf %22, %21 : vector<1x4x1xf32>
    %24 = vector.broadcast %19 : vector<1x4x1xf32> to vector<2x4x256xf32>
    %25 = arith.mulf %0, %24 : vector<2x4x256xf32>
    %26 = vector.broadcast %23 : vector<1x4x1xf32> to vector<2x4x256xf32>
    %27 = arith.addf %25, %26 : vector<2x4x256xf32>
    %cst_11 = arith.constant 0.000000e+00 : f32
    %28 = vector.broadcast %cst_11 : f32 to vector<2x4x256xf32>
    %29 = arith.maximumf %27, %28 : vector<2x4x256xf32>
    %c0_12 = arith.constant 0 : index
    %c0_13 = arith.constant 0 : index
    %c0_14 = arith.constant 0 : index
    %30 = vector.load %arg4[%c0_12, %c0_13, %c0_14] : memref<2x4x256xf32, #tpu.memory_space<vmem>>, vector<2x4x256xf32>
    tpu.vector_store %arg4[%c0_12, %c0_13, %c0_14], %29 {strides = array<i32>} : memref<2x4x256xf32, #tpu.memory_space<vmem>>, vector<2x4x256xf32>,
    return
  }
  func.func @transform_0(%arg0: i32) -> (i32, i32, i32) {
    %c0_i32 = arith.constant 0 : i32
    %c0_i32_0 = arith.constant 0 : i32
    %c0_i32_1 = arith.constant 0 : i32
    return %c0_i32, %arg0, %c0_i32_0 : i32, i32, i32
  }
  func.func @transform_1(%arg0: i32) -> (i32, i32) {
    %c0_i32 = arith.constant 0 : i32
    %c0_i32_0 = arith.constant 0 : i32
    return %arg0, %c0_i32 : i32, i32
  }
  func.func @transform_2(%arg0: i32) -> (i32, i32) {
    %c0_i32 = arith.constant 0 : i32
    %c0_i32_0 = arith.constant 0 : i32
    return %arg0, %c0_i32 : i32, i32
  }
  func.func @transform_3(%arg0: i32) -> (i32, i32, i32) {
    %c0_i32 = arith.constant 0 : i32
    %c0_i32_0 = arith.constant 0 : i32
    %c0_i32_1 = arith.constant 0 : i32
    return %c0_i32, %arg0, %c0_i32_0 : i32, i32, i32
  }
}

</mosaic_0001>

<llo_original>
// kernel: tpu_custom_call.1
$region0: #{tpu_custom_call.1}
  #allocation0 [shape = 'u32[]', space=smem, size = 0x4, offset = 0x4, fixed_abs, tag = 'smem constant byte address 0x4 - core index']
  #allocation1 [shape = 'u32[144,128]{1,0:T(1,128)}', space=vmem, size = 0x12000, scoped, tag = 'internal scratch']
  %s0 = inlined_call_operand.hbm [shape: f32[2,4,256], index: 0, kind: input, shape index: {}]
  %s1 = inlined_call_operand.vmem [shape: f32[4,1], index: 1, kind: input, shape index: {}]
  %s2 = inlined_call_operand.vmem [shape: f32[4,1], index: 2, kind: input, shape index: {}]
  %s3 = inlined_call_operand.hbm [shape: f32[2,4,256], index: 3, kind: output, shape index: {}]
  %s4 = sld [smem:[#allocation0]]
  $region26: #{tpu_custom_call.1} parent=0
    _
  %s6 = ssub.s32 1, %s4
  %s7 = scalar_select 0, %s6, %s4
  $region1: #{tpu_custom_call.1} parent=0
    #allocation2 [shape = 'u8[8192]{0}', space=vmem, size = 0x2000, scoped, tag = 'input window, operand 0, single buffered']
    #allocation3 [shape = 's32[1]{0}', space=sflag, size = 0x4, scoped, tag = 'scoped memory for tpu_custom_call.1']
    #allocation4 [shape = 's32[1]{0}', space=sflag, size = 0x4, scoped, tag = 'scoped memory for tpu_custom_call.1']
    #allocation5 [shape = 'u8[8192]{0}', space=vmem, size = 0x2000, scoped, tag = 'output window, operand 0, single buffered']
    %8 = vsyncpa [#allocation3], 0
    %9 = vsyncpa [#allocation4], 0
    // Predicated region
    $region2: #{tpu_custom_call.1} parent=1 // pred_check
      _
    $region3: #{tpu_custom_call.1} parent=1 // pred_check_branch
      %11 = sbr.rel (0) target = $region5
    $region4: #{tpu_custom_call.1} parent=1 // pred_region
      %s13 = ssub.s32 256, 256
      %14 = vsyncadd [#allocation3], %s13
      %s15 = sshll.u32 [#allocation2], 4
      %s16 = int_to_ptr.vmem [resolvable:$true] %s15
      %21 = dma.hbm_to_vmem [thread:$0]  %s0, 256, %s16, [#allocation3], 128, 128, 8
    $region5: #{tpu_custom_call.1} parent=1 // pred_fallthru
      _
    // Predicated region
    $region6: #{tpu_custom_call.1} parent=1 // pred_check
      _
    $region7: #{tpu_custom_call.1} parent=1 // pred_check_branch
      %23 = sbr.rel (0) target = $region9
    $region8: #{tpu_custom_call.1} parent=1 // pred_region
      _
    $region9: #{tpu_custom_call.1} parent=1 // pred_fallthru
      _
    // Predicated region
    $region10: #{tpu_custom_call.1} parent=1 // pred_check
      _
    $region11: #{tpu_custom_call.1} parent=1 // pred_check_branch
      %25 = sbr.rel (0) target = $region13
    $region12: #{tpu_custom_call.1} parent=1 // pred_region
      _
    $region13: #{tpu_custom_call.1} parent=1 // pred_fallthru
      _
    // Predicated region
    $region14: #{tpu_custom_call.1} parent=1 // pred_check
      _
    $region15: #{tpu_custom_call.1} parent=1 // pred_check_branch
      %27 = sbr.rel (0) target = $region17
    $region16: #{tpu_custom_call.1} parent=1 // pred_region
      %28 = dma.done [#allocation3], 256
    $region17: #{tpu_custom_call.1} parent=1 // pred_fallthru
      _
    %v29 = vld [vmem:[#allocation2] sm:$0xff]
    %v30 = vld [vmem:[#allocation2 + $0x8] sm:$0xff]
    %v33 = vcombine.high %v29, %v29
    %v34 = vcombine.high %v30, %v30
    %vm37 = vcmask 1043456
    %v38 = vsel %vm37, %v29, 0.0
    %v39 = vsel %vm37, %v33, 0.0
    %v40 = vadd.f32 %v38, %v39
    %v41 = vsel %vm37, %v30, 0.0
    %v42 = vadd.f32 %v40, %v41
    %v43 = vsel %vm37, %v34, 0.0
    %v44 = vadd.f32 %v42, %v43
    %45 = vadd.xlane.f32.xlu0 %v44
    %v46 = vpop.xlane.xlu0 %45
    %v47 = vmul.f32 %v29, %v29
    %v48 = vmul.f32 %v30, %v30
    %v51 = vcombine.high %v47, %v47
    %v52 = vcombine.high %v48, %v48
    %v55 = vsel %vm37, %v47, 0.0
    %v56 = vsel %vm37, %v51, 0.0
    %v57 = vadd.f32 %v55, %v56
    %v58 = vsel %vm37, %v48, 0.0
    %v59 = vadd.f32 %v57, %v58
    %v60 = vsel %vm37, %v52, 0.0
    %v61 = vadd.f32 %v59, %v60
    %62 = vadd.xlane.f32.xlu0 %v61
    %v63 = vpop.xlane.xlu0 %62
    %v64 = vmul.f32 %v46, 0.001953125
    %v65 = vmul.f32 %v63, 0.001953125
    %v66 = vmul.f32 %v64, %v64
    %v67 = vsub.f32 %v65, %v66
    %v68 = vmax.f32 %v67, 0.0
    %v69 = vld [vmem:[%s1] sm:$0xf]
    %v70 = vadd.f32 %v68, 1e-05
    %v71 = vrsqrt.pop %v70
    %v72 = vmul.f32 %v69, %v71
    %v73 = vld [vmem:[%s2] sm:$0xf]
    %v74 = vmul.f32 %v64, %v72
    %v75 = vsub.f32 %v73, %v74
    %77 = vset.pattern.permute.xlu0 0
    %78 = vperm.xlu0 %77, %v72
    %v79 = vpop.permute.xlu0 %78
    %v81 = vunpack.c.l.s4 839922192
    %v82 = vunpack.c.0.s8 %v81
    %v83 = vlaneseq
    %v84 = vshrl.u32 %v83, 7
    %v85 = vsub.s32 %v82, %v84
    %v86 = vrot.slane %v79, %v85
    %v88 = vmul.f32 %v29, %v86
    %v89 = vmul.f32 %v30, %v86
    %91 = vset.pattern.permute.xlu0 0
    %92 = vperm.xlu0 %91, %v75
    %v93 = vpop.permute.xlu0 %92
    %v95 = vunpack.c.l.s4 839922192
    %v96 = vunpack.c.0.s8 %v95
    %v97 = vlaneseq
    %v98 = vshrl.u32 %v97, 7
    %v99 = vsub.s32 %v96, %v98
    %v100 = vrot.slane %v93, %v99
    %v102 = vadd.f32 %v88, %v100
    %v103 = vadd.f32 %v89, %v100
    %v104 = vmax.f32 %v102, 0.0
    %v105 = vmax.f32 %v103, 0.0
    %106 = vst [vmem:[#allocation5] sm:$0xff] %v104
    %107 = vst [vmem:[#allocation5 + $0x8] sm:$0xff] %v105
    // Predicated region
    $region18: #{tpu_custom_call.1} parent=1 // pred_check
      _
    $region19: #{tpu_custom_call.1} parent=1 // pred_check_branch
      %109 = sbr.rel (0) target = $region21
    $region20: #{tpu_custom_call.1} parent=1 // pred_region
      %s111 = ssub.s32 256, 256
      %112 = vsyncadd [#allocation4], %s111
      %s113 = sshll.u32 [#allocation5], 4
      %s114 = int_to_ptr.vmem [resolvable:$true] %s113
      %119 = dma.vmem_to_hbm [thread:$0]  %s114, 256, %s3, [#allocation4], 128, 128, 8
    $region21: #{tpu_custom_call.1} parent=1 // pred_fallthru
      _
    // Predicated region
    $region22: #{tpu_custom_call.1} parent=1 // pred_check
      _
    $region23: #{tpu_custom_call.1} parent=1 // pred_check_branch
      %121 = sbr.rel (0) target = $region25
    $region24: #{tpu_custom_call.1} parent=1 // pred_region
      %122 = dma.done [#allocation4], 256
    $region25: #{tpu_custom_call.1} parent=1 // pred_fallthru
      _
    %123 = vsyncpa [#allocation3], 1
    %124 = vsyncpa [#allocation4], 1

</llo_original>
